<compile_context>
chip_gen: v7x
topology: tpu7x:2x2x1
jax: 0.10.0
libtpu: 0.0.40
codegen_flags: <defaults>
</compile_context>

<pallas_src>
import math

import jax
import jax.numpy as jnp
from jax.experimental import pallas as pl
from jax.experimental.pallas import tpu as pltpu

_LANES = 512                    # lane (last) dim of the 2-D slab; multiple of 128
_TARGET_BLOCK_BYTES = 1 << 20   # ~1 MiB per-operand block


def _lpsum_kernel(mx_ref, vx_ref, my_ref, vy_ref, m_out_ref, v_out_ref):
    # Elementwise hot path: two independent adds on the current VMEM tiles.
    m_out_ref[...] = mx_ref[...] + my_ref[...]
    v_out_ref[...] = vx_ref[...] + vy_ref[...]


def _round_up(x, m):
    return ((x + m - 1) // m) * m


def _lpsum_2d(mx2, vx2, my2, vy2, tile_rows):
    """Run the elementwise-sum kernel on lane-dense 2D (rows, _LANES) slabs."""
    rows, cols = mx2.shape
    grid = (pl.cdiv(rows, tile_rows),)
    blk = pl.BlockSpec((tile_rows, cols), lambda i: (i, 0))

    it_m = jnp.dtype(mx2.dtype).itemsize
    it_v = jnp.dtype(vx2.dtype).itemsize
    total = rows * cols
    cost = pl.CostEstimate(
        flops=2 * total,
        transcendentals=0,
        bytes_accessed=3 * total * (it_m + it_v),
    )

    return pl.pallas_call(
        _lpsum_kernel,
        out_shape=(
            jax.ShapeDtypeStruct((rows, cols), mx2.dtype),
            jax.ShapeDtypeStruct((rows, cols), vx2.dtype),
        ),
        grid_spec=pltpu.PrefetchScalarGridSpec(
            num_scalar_prefetch=0,
            grid=grid,
            in_specs=[blk, blk, blk, blk],
            out_specs=[blk, blk],
        ),
        compiler_params=pltpu.CompilerParams(
            dimension_semantics=("parallel",),
            vmem_limit_bytes=32 * 1024 * 1024,
        ),
        cost_estimate=cost,
    )(mx2, vx2, my2, vy2)


def lpsum(inputs):
    """JAX/Pallas equivalent of LPSum.forward.

    inputs = ((m_x, v_x), (m_y, v_y)); returns (m_x + m_y, v_x + v_y).
    """
    (m_x, v_x), (m_y, v_y) = inputs
    assert m_x.shape == m_y.shape == v_x.shape == v_y.shape
    assert m_x.dtype == m_y.dtype and v_x.dtype == v_y.dtype

    orig_shape = m_x.shape
    total = int(math.prod(orig_shape))

    it_m = jnp.dtype(m_x.dtype).itemsize
    it_v = jnp.dtype(v_x.dtype).itemsize
    # Sublane packing multiple: 8 for 4-byte, 16 for 2-byte, 32 for 1-byte dtypes.
    sub = max(8, 32 // min(it_m, it_v))
    # ~1 MiB per-operand block, rounded down to a sublane-packed row count.
    target_rows = max(
        sub, (_TARGET_BLOCK_BYTES // (_LANES * max(it_m, it_v))) // sub * sub
    )

    # Lane-dense re-presentation: flatten, (rarely) pad by < _LANES elements so
    # the flat length is a multiple of the lane width, view as (rows, _LANES).
    padded_total = _round_up(total, _LANES)
    pad = padded_total - total
    rows = padded_total // _LANES

    def to2d(a):
        flat = a.reshape(-1)
        if pad:
            flat = jnp.pad(flat, (0, pad))
        return flat.reshape(rows, _LANES)

    mx2, vx2, my2, vy2 = to2d(m_x), to2d(v_x), to2d(m_y), to2d(v_y)

    if rows <= target_rows:
        # Small input: one full-array block (block dims == array dims is always
        # legal, no (8,128) divisibility needed, no masking).
        tile_rows = rows
    else:
        # Large input: ~1 MiB tiles; a partial last grid step (if any) is
        # handled by the Pallas pipeline (out-of-bounds writes dropped), which
        # is safe for pure elementwise adds.
        tile_rows = target_rows

    m_out2, v_out2 = _lpsum_2d(mx2, vx2, my2, vy2, tile_rows)

    def from2d(a2):
        flat = a2.reshape(-1)
        if pad:
            flat = flat[:total]
        return flat.reshape(orig_shape)

    return from2d(m_out2), from2d(v_out2)


if __name__ == "__main__":
    key = jax.random.PRNGKey(0)
    k1, k2, k3, k4 = jax.random.split(key, 4)

    # Small NCHW shapes: batch=2, channels=4, spatial=16x16.
    shape = (2, 4, 16, 16)
    m_x = jax.random.normal(k1, shape, dtype=jnp.float32)
    v_x = jax.random.uniform(k2, shape, dtype=jnp.float32)  # variances >= 0
    m_y = jax.random.normal(k3, shape, dtype=jnp.float32)
    v_y = jax.random.uniform(k4, shape, dtype=jnp.float32)

    m_out, v_out = lpsum(((m_x, v_x), (m_y, v_y)))
    jax.block_until_ready((m_out, v_out))

    # Correctness check vs. plain JAX reference.
    assert m_out.shape == shape and v_out.shape == shape
    assert jnp.allclose(m_out, m_x + m_y, atol=1e-6)
    assert jnp.allclose(v_out, v_x + v_y, atol=1e-6)

    print("KERNEL_OK")
</pallas_src>

<mosaic_0001>
module attributes {stable_mosaic.version = 11 : i64} {
  func.func @_lpsum_kernel(%arg0: i32, %arg1: memref<4x512xf32, #tpu.memory_space<vmem>>, %arg2: memref<4x512xf32, #tpu.memory_space<vmem>>, %arg3: memref<4x512xf32, #tpu.memory_space<vmem>>, %arg4: memref<4x512xf32, #tpu.memory_space<vmem>>, %arg5: memref<4x512xf32, #tpu.memory_space<vmem>>, %arg6: memref<4x512xf32, #tpu.memory_space<vmem>>) attributes {dimension_semantics = [#tpu.dimension_semantics<parallel>], iteration_bounds = array<i64: 1>, scalar_prefetch = 0 : i64, scratch_operands = 0 : i64, tpu.core_type = #tpu.core_type<tc>, window_params = [{transform_indices = @transform_0, window_bounds = array<i64: 4, 512>}, {transform_indices = @transform_1, window_bounds = array<i64: 4, 512>}, {transform_indices = @transform_2, window_bounds = array<i64: 4, 512>}, {transform_indices = @transform_3, window_bounds = array<i64: 4, 512>}, {transform_indices = @transform_4, window_bounds = array<i64: 4, 512>}, {transform_indices = @transform_5, window_bounds = array<i64: 4, 512>}]} {
    %c0 = arith.constant 0 : index
    %c0_0 = arith.constant 0 : index
    %0 = vector.load %arg1[%c0, %c0_0] : memref<4x512xf32, #tpu.memory_space<vmem>>, vector<4x512xf32>
    %c0_1 = arith.constant 0 : index
    %c0_2 = arith.constant 0 : index
    %1 = vector.load %arg3[%c0_1, %c0_2] : memref<4x512xf32, #tpu.memory_space<vmem>>, vector<4x512xf32>
    %2 = arith.addf %0, %1 : vector<4x512xf32>
    %c0_3 = arith.constant 0 : index
    %c0_4 = arith.constant 0 : index
    %3 = vector.load %arg5[%c0_3, %c0_4] : memref<4x512xf32, #tpu.memory_space<vmem>>, vector<4x512xf32>
    tpu.vector_store %arg5[%c0_3, %c0_4], %2 {strides = array<i32>} : memref<4x512xf32, #tpu.memory_space<vmem>>, vector<4x512xf32>,
    %c0_5 = arith.constant 0 : index
    %c0_6 = arith.constant 0 : index
    %4 = vector.load %arg2[%c0_5, %c0_6] : memref<4x512xf32, #tpu.memory_space<vmem>>, vector<4x512xf32>
    %c0_7 = arith.constant 0 : index
    %c0_8 = arith.constant 0 : index
    %5 = vector.load %arg4[%c0_7, %c0_8] : memref<4x512xf32, #tpu.memory_space<vmem>>, vector<4x512xf32>
    %6 = arith.addf %4, %5 : vector<4x512xf32>
    %c0_9 = arith.constant 0 : index
    %c0_10 = arith.constant 0 : index
    %7 = vector.load %arg6[%c0_9, %c0_10] : memref<4x512xf32, #tpu.memory_space<vmem>>, vector<4x512xf32>
    tpu.vector_store %arg6[%c0_9, %c0_10], %6 {strides = array<i32>} : memref<4x512xf32, #tpu.memory_space<vmem>>, vector<4x512xf32>,
    return
  }
  func.func @transform_0(%arg0: i32) -> (i32, i32) {
    %c0_i32 = arith.constant 0 : i32
    %c0_i32_0 = arith.constant 0 : i32
    return %arg0, %c0_i32 : i32, i32
  }
  func.func @transform_1(%arg0: i32) -> (i32, i32) {
    %c0_i32 = arith.constant 0 : i32
    %c0_i32_0 = arith.constant 0 : i32
    return %arg0, %c0_i32 : i32, i32
  }
  func.func @transform_2(%arg0: i32) -> (i32, i32) {
    %c0_i32 = arith.constant 0 : i32
    %c0_i32_0 = arith.constant 0 : i32
    return %arg0, %c0_i32 : i32, i32
  }
  func.func @transform_3(%arg0: i32) -> (i32, i32) {
    %c0_i32 = arith.constant 0 : i32
    %c0_i32_0 = arith.constant 0 : i32
    return %arg0, %c0_i32 : i32, i32
  }
  func.func @transform_4(%arg0: i32) -> (i32, i32) {
    %c0_i32 = arith.constant 0 : i32
    %c0_i32_0 = arith.constant 0 : i32
    return %arg0, %c0_i32 : i32, i32
  }
  func.func @transform_5(%arg0: i32) -> (i32, i32) {
    %c0_i32 = arith.constant 0 : i32
    %c0_i32_0 = arith.constant 0 : i32
    return %arg0, %c0_i32 : i32, i32
  }
}

</mosaic_0001>

<llo_original>
// kernel: tpu_custom_call.1
$region0: #{tpu_custom_call.1}
  #allocation0 [shape = 'u32[]', space=smem, size = 0x4, offset = 0x4, fixed_abs, tag = 'smem constant byte address 0x4 - core index']
  #allocation1 [shape = 'u32[144,128]{1,0:T(1,128)}', space=vmem, size = 0x12000, scoped, tag = 'internal scratch']
  %s0 = inlined_call_operand.hbm [shape: f32[4,512], index: 0, kind: input, shape index: {}]
  %s1 = inlined_call_operand.hbm [shape: f32[4,512], index: 1, kind: input, shape index: {}]
  %s2 = inlined_call_operand.hbm [shape: f32[4,512], index: 2, kind: input, shape index: {}]
  %s3 = inlined_call_operand.hbm [shape: f32[4,512], index: 3, kind: input, shape index: {}]
  %s4 = inlined_call_operand.hbm [shape: f32[4,512], index: 4, kind: output, shape index: {0}]
  %s5 = inlined_call_operand.hbm [shape: f32[4,512], index: 5, kind: output, shape index: {1}]
  %6 = xla_tuple %s4, %s5
  %s7 = sld [smem:[#allocation0]]
  $region50: #{tpu_custom_call.1} parent=0
    _
  %s9 = ssub.s32 1, %s7
  %s10 = scalar_select 0, %s9, %s7
  $region1: #{tpu_custom_call.1} parent=0
    #allocation2 [shape = 'u8[8192]{0}', space=vmem, size = 0x2000, scoped, tag = 'input window, operand 0, single buffered']
    #allocation3 [shape = 's32[1]{0}', space=sflag, size = 0x4, scoped, tag = 'scoped memory for tpu_custom_call.1']
    #allocation4 [shape = 's32[1]{0}', space=sflag, size = 0x4, scoped, tag = 'scoped memory for tpu_custom_call.1']
    #allocation5 [shape = 'u8[8192]{0}', space=vmem, size = 0x2000, scoped, tag = 'input window, operand 1, single buffered']
    #allocation6 [shape = 's32[1]{0}', space=sflag, size = 0x4, scoped, tag = 'scoped memory for tpu_custom_call.1']
    #allocation7 [shape = 'u8[8192]{0}', space=vmem, size = 0x2000, scoped, tag = 'input window, operand 2, single buffered']
    #allocation8 [shape = 'u8[8192]{0}', space=vmem, size = 0x2000, scoped, tag = 'input window, operand 3, single buffered']
    #allocation9 [shape = 's32[1]{0}', space=sflag, size = 0x4, scoped, tag = 'scoped memory for tpu_custom_call.1']
    #allocation10 [shape = 'u8[8192]{0}', space=vmem, size = 0x2000, scoped, tag = 'output window, operand 0, single buffered']
    #allocation11 [shape = 'u8[8192]{0}', space=vmem, size = 0x2000, scoped, tag = 'output window, operand 1, single buffered']
    #allocation12 [shape = 's32[1]{0}', space=sflag, size = 0x4, scoped, tag = 'scoped memory for tpu_custom_call.1']
    %11 = vsyncpa [#allocation3], 0
    %12 = vsyncpa [#allocation6], 0
    %13 = vsyncpa [#allocation9], 0
    %14 = vsyncpa [#allocation4], 0
    %15 = vsyncpa [#allocation12], 0
    // Predicated region
    $region2: #{tpu_custom_call.1} parent=1 // pred_check
      _
    $region3: #{tpu_custom_call.1} parent=1 // pred_check_branch
      %17 = sbr.rel (0) target = $region5
    $region4: #{tpu_custom_call.1} parent=1 // pred_region
      %s19 = ssub.s32 256, 256
      %20 = vsyncadd [#allocation3], %s19
      %s22 = sshll.u32 [#allocation2], 4
      %s23 = int_to_ptr.vmem [resolvable:$true] %s22
      %25 = dma.hbm_to_vmem [thread:$0]  %s0, 256, %s23, [#allocation3]
    $region5: #{tpu_custom_call.1} parent=1 // pred_fallthru
      _
    // Predicated region
    $region6: #{tpu_custom_call.1} parent=1 // pred_check
      _
    $region7: #{tpu_custom_call.1} parent=1 // pred_check_branch
      %27 = sbr.rel (0) target = $region9
    $region8: #{tpu_custom_call.1} parent=1 // pred_region
      %s29 = ssub.s32 256, 256
      %30 = vsyncadd [#allocation6], %s29
      %s32 = sshll.u32 [#allocation5], 4
      %s33 = int_to_ptr.vmem [resolvable:$true] %s32
      %35 = dma.hbm_to_vmem [thread:$0]  %s1, 256, %s33, [#allocation6]
    $region9: #{tpu_custom_call.1} parent=1 // pred_fallthru
      _
    // Predicated region
    $region10: #{tpu_custom_call.1} parent=1 // pred_check
      _
    $region11: #{tpu_custom_call.1} parent=1 // pred_check_branch
      %37 = sbr.rel (0) target = $region13
    $region12: #{tpu_custom_call.1} parent=1 // pred_region
      %s39 = ssub.s32 256, 256
      %40 = vsyncadd [#allocation6], %s39
      %s42 = sshll.u32 [#allocation7], 4
      %s43 = int_to_ptr.vmem [resolvable:$true] %s42
      %45 = dma.hbm_to_vmem [thread:$0]  %s2, 256, %s43, [#allocation6]
    $region13: #{tpu_custom_call.1} parent=1 // pred_fallthru
      _
    // Predicated region
    $region14: #{tpu_custom_call.1} parent=1 // pred_check
      _
    $region15: #{tpu_custom_call.1} parent=1 // pred_check_branch
      %47 = sbr.rel (0) target = $region17
    $region16: #{tpu_custom_call.1} parent=1 // pred_region
      %s49 = ssub.s32 256, 256
      %50 = vsyncadd [#allocation9], %s49
      %s52 = sshll.u32 [#allocation8], 4
      %s53 = int_to_ptr.vmem [resolvable:$true] %s52
      %55 = dma.hbm_to_vmem [thread:$0]  %s3, 256, %s53, [#allocation9]
    $region17: #{tpu_custom_call.1} parent=1 // pred_fallthru
      _
    // Predicated region
    $region18: #{tpu_custom_call.1} parent=1 // pred_check
      _
    $region19: #{tpu_custom_call.1} parent=1 // pred_check_branch
      %57 = sbr.rel (0) target = $region21
    $region20: #{tpu_custom_call.1} parent=1 // pred_region
      %58 = dma.done [#allocation3], 256
    $region21: #{tpu_custom_call.1} parent=1 // pred_fallthru
      _
    // Predicated region
    $region22: #{tpu_custom_call.1} parent=1 // pred_check
      _
    $region23: #{tpu_custom_call.1} parent=1 // pred_check_branch
      %60 = sbr.rel (0) target = $region25
    $region24: #{tpu_custom_call.1} parent=1 // pred_region
      %61 = dma.done [#allocation6], 256
    $region25: #{tpu_custom_call.1} parent=1 // pred_fallthru
      _
    // Predicated region
    $region26: #{tpu_custom_call.1} parent=1 // pred_check
      _
    $region27: #{tpu_custom_call.1} parent=1 // pred_check_branch
      %63 = sbr.rel (0) target = $region29
    $region28: #{tpu_custom_call.1} parent=1 // pred_region
      %64 = dma.done [#allocation6], 256
    $region29: #{tpu_custom_call.1} parent=1 // pred_fallthru
      _
    // Predicated region
    $region30: #{tpu_custom_call.1} parent=1 // pred_check
      _
    $region31: #{tpu_custom_call.1} parent=1 // pred_check_branch
      %66 = sbr.rel (0) target = $region33
    $region32: #{tpu_custom_call.1} parent=1 // pred_region
      %67 = dma.done [#allocation9], 256
    $region33: #{tpu_custom_call.1} parent=1 // pred_fallthru
      _
    %v68 = vld [vmem:[#allocation2] sm:$0xff]
    %v69 = vld [vmem:[#allocation2 + $0x8] sm:$0xff]
    %v70 = vld [vmem:[#allocation7] sm:$0xff]
    %v71 = vld [vmem:[#allocation7 + $0x8] sm:$0xff]
    %v72 = vadd.f32 %v68, %v70
    %v73 = vadd.f32 %v69, %v71
    %74 = vst [vmem:[#allocation10] sm:$0xff] %v72
    %75 = vst [vmem:[#allocation10 + $0x8] sm:$0xff] %v73
    %v76 = vld [vmem:[#allocation5] sm:$0xff]
    %v77 = vld [vmem:[#allocation5 + $0x8] sm:$0xff]
    %v78 = vld [vmem:[#allocation8] sm:$0xff]
    %v79 = vld [vmem:[#allocation8 + $0x8] sm:$0xff]
    %v80 = vadd.f32 %v76, %v78
    %v81 = vadd.f32 %v77, %v79
    %82 = vst [vmem:[#allocation11] sm:$0xff] %v80
    %83 = vst [vmem:[#allocation11 + $0x8] sm:$0xff] %v81
    // Predicated region
    $region34: #{tpu_custom_call.1} parent=1 // pred_check
      _
    $region35: #{tpu_custom_call.1} parent=1 // pred_check_branch
      %85 = sbr.rel (0) target = $region37
    $region36: #{tpu_custom_call.1} parent=1 // pred_region
      %s87 = ssub.s32 256, 256
      %88 = vsyncadd [#allocation4], %s87
      %s90 = sshll.u32 [#allocation10], 4
      %s91 = int_to_ptr.vmem [resolvable:$true] %s90
      %93 = dma.vmem_to_hbm [thread:$0]  %s91, 256, %s4, [#allocation4]
    $region37: #{tpu_custom_call.1} parent=1 // pred_fallthru
      _
    // Predicated region
    $region38: #{tpu_custom_call.1} parent=1 // pred_check
      _
    $region39: #{tpu_custom_call.1} parent=1 // pred_check_branch
      %95 = sbr.rel (0) target = $region41
    $region40: #{tpu_custom_call.1} parent=1 // pred_region
      %s97 = ssub.s32 256, 256
      %98 = vsyncadd [#allocation12], %s97
      %s100 = sshll.u32 [#allocation11], 4
      %s101 = int_to_ptr.vmem [resolvable:$true] %s100
      %103 = dma.vmem_to_hbm [thread:$0]  %s101, 256, %s5, [#allocation12]
    $region41: #{tpu_custom_call.1} parent=1 // pred_fallthru
      _
    // Predicated region
    $region42: #{tpu_custom_call.1} parent=1 // pred_check
      _
    $region43: #{tpu_custom_call.1} parent=1 // pred_check_branch
      %105 = sbr.rel (0) target = $region45
    $region44: #{tpu_custom_call.1} parent=1 // pred_region
      %106 = dma.done [#allocation4], 256
    $region45: #{tpu_custom_call.1} parent=1 // pred_fallthru
      _
    // Predicated region
    $region46: #{tpu_custom_call.1} parent=1 // pred_check
      _
    $region47: #{tpu_custom_call.1} parent=1 // pred_check_branch
      %108 = sbr.rel (0) target = $region49
    $region48: #{tpu_custom_call.1} parent=1 // pred_region
      %109 = dma.done [#allocation12], 256
    $region49: #{tpu_custom_call.1} parent=1 // pred_fallthru
      _
    %110 = vsyncpa [#allocation3], 1
    %111 = vsyncpa [#allocation6], 1
    %112 = vsyncpa [#allocation9], 1
    %113 = vsyncpa [#allocation4], 1
    %114 = vsyncpa [#allocation12], 1

</llo_original>
